<compile_context>
chip_gen: v7x
topology: tpu7x:2x2x1
jax: 0.10.0
libtpu: 0.0.40
codegen_flags: <defaults>
</compile_context>

<pallas_src>
import functools

import numpy as np

import jax
import jax.numpy as jnp
from jax import lax
from jax.experimental import pallas as pl
from jax.experimental.pallas import tpu as pltpu


def _residual_kernel(x_ref, w1_ref, b1_ref, w2_ref, b2_ref, mask_ref,
                     o_ref, patches_ref, *, H, W):
    """One batch element per grid step.

    x_ref      : (1, C, H*W)    input, spatial flattened onto lanes
    w1_ref     : (C, 9*C)       conv1 weight, columns ordered (kh, kw, cin)
    b1_ref     : (C, 1)         conv1 bias
    w2_ref     : (C, 9*C)       conv2 weight
    b2_ref     : (C, 1)         conv2 bias
    mask_ref   : (9, H*W) f32   per-tap border masks (== the zero padding)
    o_ref      : (1, C, H*W)    output
    patches_ref: (9*C, H*W) f32 VMEM scratch holding the im2col matrix
    """
    HW = H * W
    C = x_ref.shape[1]

    m = mask_ref[...]  # (9, HW), hoisted once

    def conv3x3_t(w_ref, b_ref, inp):
        """Transposed 3x3 conv (pad=1): returns (Cout, HW) = W @ im2col(inp) + b."""
        # patches[t*C + cin, p] = inp[cin, p + dh*W + dw] if (h+dh, w+dw) in-image
        # else 0.  The lane roll brings inp[:, p + off] to position p (wrapping
        # mod HW); every wrapped or row-crossing position has an out-of-range
        # h+dh or w+dw and is zeroed by the mask.  Each row of the scratch is
        # fully overwritten -> no zero-init, unmasked lane-dense stores.
        t = 0
        for dh in (-1, 0, 1):
            for dw in (-1, 0, 1):
                off = dh * W + dw                      # static tap offset (flat)
                if off == 0:
                    shifted = inp
                else:
                    shifted = pltpu.roll(inp, shift=(-off) % HW, axis=1)
                patches_ref[t * C:(t + 1) * C, :] = shifted * m[t:t + 1, :]
                t += 1
        # Single MXU matmul per conv: (Cout, 9C) @ (9C, HW) -> (Cout, HW), lane-dense.
        return jnp.dot(w_ref[...], patches_ref[...],
                       preferred_element_type=jnp.float32) + b_ref[...]

    x = x_ref[0].astype(jnp.float32)                       # (C, HW)
    y1 = jnp.maximum(conv3x3_t(w1_ref, b1_ref, x), 0.0)    # conv1 + ReLU
    y2 = conv3x3_t(w2_ref, b2_ref, y1)                     # conv2
    o_ref[0] = y2.astype(o_ref.dtype)


def residual_forward(x_nchw, w1, b1, w2, b2):
    """x_nchw: (N, C, H, W); w*: (Cout, Cin, 3, 3) (PyTorch layout); b*: (C,).

    Returns conv2(relu(conv1(x))) with padding=1, shape (N, C, H, W).
    """
    N, C, H, W = x_nchw.shape
    HW = H * W

    # Lane-dense views (pure reshapes, no data movement, no padding round trip).
    x_flat = x_nchw.reshape(N, C, HW)
    # (Cout, Cin, kh, kw) -> (Cout, kh, kw, Cin) -> (Cout, 9*Cin): column order
    # matches the (kh, kw, cin) row order of the in-kernel im2col matrix.
    w1f = jnp.transpose(w1, (0, 2, 3, 1)).reshape(C, 9 * C)
    w2f = jnp.transpose(w2, (0, 2, 3, 1)).reshape(C, 9 * C)
    b1r = b1.reshape(C, 1).astype(jnp.float32)
    b2r = b2.reshape(C, 1).astype(jnp.float32)

    # 3x3 border masks over flat positions: mask[t, h*W + w] = 1 iff (h+dh, w+dw)
    # is inside the image for tap t = (dh+1)*3 + (dw+1).  This IS the zero padding
    # (and it also kills the roll wrap-around values inside the kernel).
    hh = np.arange(H).repeat(W)          # h index per flat position
    ww = np.tile(np.arange(W), H)        # w index per flat position
    masks = []
    for dh in (-1, 0, 1):
        for dw in (-1, 0, 1):
            valid = ((hh + dh >= 0) & (hh + dh < H) &
                     (ww + dw >= 0) & (ww + dw < W))
            masks.append(valid)
    mask = jnp.asarray(np.stack(masks).astype(np.float32))   # (9, HW)

    kernel = functools.partial(_residual_kernel, H=H, W=W)

    out_flat = pl.pallas_call(
        kernel,
        out_shape=jax.ShapeDtypeStruct((N, C, HW), x_nchw.dtype),
        grid_spec=pltpu.PrefetchScalarGridSpec(
            num_scalar_prefetch=0,
            grid=(N,),
            in_specs=[
                pl.BlockSpec((1, C, HW), lambda n: (n, 0, 0)),   # x, lane-dense
                pl.BlockSpec((C, 9 * C), lambda n: (0, 0)),      # w1 (tiny, invariant)
                pl.BlockSpec((C, 1), lambda n: (0, 0)),          # b1
                pl.BlockSpec((C, 9 * C), lambda n: (0, 0)),      # w2
                pl.BlockSpec((C, 1), lambda n: (0, 0)),          # b2
                pl.BlockSpec((9, HW), lambda n: (0, 0)),         # border masks
            ],
            out_specs=pl.BlockSpec((1, C, HW), lambda n: (n, 0, 0)),
            scratch_shapes=[pltpu.VMEM((9 * C, HW), jnp.float32)],
        ),
        compiler_params=pltpu.CompilerParams(
            dimension_semantics=("parallel",)),
    )(x_flat, w1f, b1r, w2f, b2r, mask)

    return out_flat.reshape(N, C, H, W)


def _reference(x_nchw, w1, b1, w2, b2):
    dn = ("NCHW", "OIHW", "NCHW")
    y = lax.conv_general_dilated(x_nchw, w1, (1, 1), "SAME",
                                 dimension_numbers=dn) + b1.reshape(1, -1, 1, 1)
    y = jnp.maximum(y, 0.0)
    y = lax.conv_general_dilated(y, w2, (1, 1), "SAME",
                                 dimension_numbers=dn) + b2.reshape(1, -1, 1, 1)
    return y


if __name__ == "__main__":
    # Small shapes consistent with the module: batch=2, n_feats=4, spatial=16.
    N, C, H, W = 2, 4, 16, 16
    key = jax.random.PRNGKey(0)
    kx, k1, kb1, k2, kb2 = jax.random.split(key, 5)

    x = jax.random.normal(kx, (N, C, H, W), dtype=jnp.float32)

    # Conv2d(n_feats, n_feats, 3) parameters in PyTorch (Cout, Cin, kH, kW) layout.
    fan_in = C * 3 * 3
    bound = 1.0 / (fan_in ** 0.5)
    w1 = jax.random.uniform(k1, (C, C, 3, 3), jnp.float32, -bound, bound)
    b1 = jax.random.uniform(kb1, (C,), jnp.float32, -bound, bound)
    w2 = jax.random.uniform(k2, (C, C, 3, 3), jnp.float32, -bound, bound)
    b2 = jax.random.uniform(kb2, (C,), jnp.float32, -bound, bound)

    out = jax.block_until_ready(residual_forward(x, w1, b1, w2, b2))
    ref = jax.block_until_ready(_reference(x, w1, b1, w2, b2))

    assert out.shape == (N, C, H, W)
    assert jnp.allclose(out, ref, atol=1e-4, rtol=1e-4), "mismatch vs JAX reference"

    print("KERNEL_OK")
</pallas_src>

<mosaic_0001>
module attributes {stable_mosaic.version = 11 : i64} {
  func.func @_residual_kernel(%arg0: i32, %arg1: memref<1x4x256xf32, #tpu.memory_space<vmem>>, %arg2: memref<4x36xf32, #tpu.memory_space<vmem>>, %arg3: memref<4x1xf32, #tpu.memory_space<vmem>>, %arg4: memref<4x36xf32, #tpu.memory_space<vmem>>, %arg5: memref<4x1xf32, #tpu.memory_space<vmem>>, %arg6: memref<9x256xf32, #tpu.memory_space<vmem>>, %arg7: memref<1x4x256xf32, #tpu.memory_space<vmem>>, %arg8: memref<36x256xf32, #tpu.memory_space<vmem>>) attributes {dimension_semantics = [#tpu.dimension_semantics<parallel>], iteration_bounds = array<i64: 2>, scalar_prefetch = 0 : i64, scratch_operands = 1 : i64, tpu.core_type = #tpu.core_type<tc>, window_params = [{transform_indices = @transform_0, window_bounds = array<i64: 1, 4, 256>}, {pipeline_mode = #tpu.pipeline_mode<synchronous>, transform_indices = @transform_1, window_bounds = array<i64: 4, 36>}, {pipeline_mode = #tpu.pipeline_mode<synchronous>, transform_indices = @transform_2, window_bounds = array<i64: 4, 1>}, {pipeline_mode = #tpu.pipeline_mode<synchronous>, transform_indices = @transform_3, window_bounds = array<i64: 4, 36>}, {pipeline_mode = #tpu.pipeline_mode<synchronous>, transform_indices = @transform_4, window_bounds = array<i64: 4, 1>}, {pipeline_mode = #tpu.pipeline_mode<synchronous>, transform_indices = @transform_5, window_bounds = array<i64: 9, 256>}, {transform_indices = @transform_6, window_bounds = array<i64: 1, 4, 256>}]} {
    %c0 = arith.constant 0 : index
    %c0_0 = arith.constant 0 : index
    %0 = vector.load %arg6[%c0, %c0_0] : memref<9x256xf32, #tpu.memory_space<vmem>>, vector<9x256xf32>
    %c0_1 = arith.constant 0 : index
    %c0_2 = arith.constant 0 : index
    %c0_3 = arith.constant 0 : index
    %1 = vector.load %arg1[%c0_1, %c0_2, %c0_3] : memref<1x4x256xf32, #tpu.memory_space<vmem>>, vector<1x4x256xf32>
    %2 = vector.shape_cast %1 : vector<1x4x256xf32> to vector<4x256xf32>
    %c17_i32 = arith.constant 17 : i32
    %3 = tpu.dynamic_rotate %2 by %c17_i32 dim 1 : vector<4x256xf32>, i32 -> vector<4x256xf32>
    %4 = vector.extract_strided_slice %0 {offsets = [0, 0], sizes = [1, 256], strides = [1, 1]} : vector<9x256xf32> to vector<1x256xf32>
    %5 = vector.broadcast %4 : vector<1x256xf32> to vector<4x256xf32>
    %6 = arith.mulf %3, %5 : vector<4x256xf32>
    %c0_4 = arith.constant 0 : index
    %c0_5 = arith.constant 0 : index
    %7 = vector.load %arg8[%c0_4, %c0_5] : memref<36x256xf32, #tpu.memory_space<vmem>>, vector<4x256xf32>
    tpu.vector_store %arg8[%c0_4, %c0_5], %6 {strides = array<i32>} : memref<36x256xf32, #tpu.memory_space<vmem>>, vector<4x256xf32>,
    %c16_i32 = arith.constant 16 : i32
    %8 = tpu.dynamic_rotate %2 by %c16_i32 dim 1 : vector<4x256xf32>, i32 -> vector<4x256xf32>
    %9 = vector.extract_strided_slice %0 {offsets = [1, 0], sizes = [1, 256], strides = [1, 1]} : vector<9x256xf32> to vector<1x256xf32>
    %10 = vector.broadcast %9 : vector<1x256xf32> to vector<4x256xf32>
    %11 = arith.mulf %8, %10 : vector<4x256xf32>
    %c4 = arith.constant 4 : index
    %c0_6 = arith.constant 0 : index
    %12 = vector.load %arg8[%c4, %c0_6] : memref<36x256xf32, #tpu.memory_space<vmem>>, vector<4x256xf32>
    tpu.vector_store %arg8[%c4, %c0_6], %11 {strides = array<i32>} : memref<36x256xf32, #tpu.memory_space<vmem>>, vector<4x256xf32>,
    %c15_i32 = arith.constant 15 : i32
    %13 = tpu.dynamic_rotate %2 by %c15_i32 dim 1 : vector<4x256xf32>, i32 -> vector<4x256xf32>
    %14 = vector.extract_strided_slice %0 {offsets = [2, 0], sizes = [1, 256], strides = [1, 1]} : vector<9x256xf32> to vector<1x256xf32>
    %15 = vector.broadcast %14 : vector<1x256xf32> to vector<4x256xf32>
    %16 = arith.mulf %13, %15 : vector<4x256xf32>
    %c8 = arith.constant 8 : index
    %c0_7 = arith.constant 0 : index
    %17 = vector.load %arg8[%c8, %c0_7] : memref<36x256xf32, #tpu.memory_space<vmem>>, vector<4x256xf32>
    tpu.vector_store %arg8[%c8, %c0_7], %16 {strides = array<i32>} : memref<36x256xf32, #tpu.memory_space<vmem>>, vector<4x256xf32>,
    %c1_i32 = arith.constant 1 : i32
    %18 = tpu.dynamic_rotate %2 by %c1_i32 dim 1 : vector<4x256xf32>, i32 -> vector<4x256xf32>
    %19 = vector.extract_strided_slice %0 {offsets = [3, 0], sizes = [1, 256], strides = [1, 1]} : vector<9x256xf32> to vector<1x256xf32>
    %20 = vector.broadcast %19 : vector<1x256xf32> to vector<4x256xf32>
    %21 = arith.mulf %18, %20 : vector<4x256xf32>
    %c12 = arith.constant 12 : index
    %c0_8 = arith.constant 0 : index
    %22 = vector.load %arg8[%c12, %c0_8] : memref<36x256xf32, #tpu.memory_space<vmem>>, vector<4x256xf32>
    tpu.vector_store %arg8[%c12, %c0_8], %21 {strides = array<i32>} : memref<36x256xf32, #tpu.memory_space<vmem>>, vector<4x256xf32>,
    %23 = vector.extract_strided_slice %0 {offsets = [4, 0], sizes = [1, 256], strides = [1, 1]} : vector<9x256xf32> to vector<1x256xf32>
    %24 = vector.broadcast %23 : vector<1x256xf32> to vector<4x256xf32>
    %25 = arith.mulf %2, %24 : vector<4x256xf32>
    %c16 = arith.constant 16 : index
    %c0_9 = arith.constant 0 : index
    %26 = vector.load %arg8[%c16, %c0_9] : memref<36x256xf32, #tpu.memory_space<vmem>>, vector<4x256xf32>
    tpu.vector_store %arg8[%c16, %c0_9], %25 {strides = array<i32>} : memref<36x256xf32, #tpu.memory_space<vmem>>, vector<4x256xf32>,
    %c255_i32 = arith.constant 255 : i32
    %27 = tpu.dynamic_rotate %2 by %c255_i32 dim 1 : vector<4x256xf32>, i32 -> vector<4x256xf32>
    %28 = vector.extract_strided_slice %0 {offsets = [5, 0], sizes = [1, 256], strides = [1, 1]} : vector<9x256xf32> to vector<1x256xf32>
    %29 = vector.broadcast %28 : vector<1x256xf32> to vector<4x256xf32>
    %30 = arith.mulf %27, %29 : vector<4x256xf32>
    %c20 = arith.constant 20 : index
    %c0_10 = arith.constant 0 : index
    %31 = vector.load %arg8[%c20, %c0_10] : memref<36x256xf32, #tpu.memory_space<vmem>>, vector<4x256xf32>
    tpu.vector_store %arg8[%c20, %c0_10], %30 {strides = array<i32>} : memref<36x256xf32, #tpu.memory_space<vmem>>, vector<4x256xf32>,
    %c241_i32 = arith.constant 241 : i32
    %32 = tpu.dynamic_rotate %2 by %c241_i32 dim 1 : vector<4x256xf32>, i32 -> vector<4x256xf32>
    %33 = vector.extract_strided_slice %0 {offsets = [6, 0], sizes = [1, 256], strides = [1, 1]} : vector<9x256xf32> to vector<1x256xf32>
    %34 = vector.broadcast %33 : vector<1x256xf32> to vector<4x256xf32>
    %35 = arith.mulf %32, %34 : vector<4x256xf32>
    %c24 = arith.constant 24 : index
    %c0_11 = arith.constant 0 : index
    %36 = vector.load %arg8[%c24, %c0_11] : memref<36x256xf32, #tpu.memory_space<vmem>>, vector<4x256xf32>
    tpu.vector_store %arg8[%c24, %c0_11], %35 {strides = array<i32>} : memref<36x256xf32, #tpu.memory_space<vmem>>, vector<4x256xf32>,
    %c240_i32 = arith.constant 240 : i32
    %37 = tpu.dynamic_rotate %2 by %c240_i32 dim 1 : vector<4x256xf32>, i32 -> vector<4x256xf32>
    %38 = vector.extract_strided_slice %0 {offsets = [7, 0], sizes = [1, 256], strides = [1, 1]} : vector<9x256xf32> to vector<1x256xf32>
    %39 = vector.broadcast %38 : vector<1x256xf32> to vector<4x256xf32>
    %40 = arith.mulf %37, %39 : vector<4x256xf32>
    %c28 = arith.constant 28 : index
    %c0_12 = arith.constant 0 : index
    %41 = vector.load %arg8[%c28, %c0_12] : memref<36x256xf32, #tpu.memory_space<vmem>>, vector<4x256xf32>
    tpu.vector_store %arg8[%c28, %c0_12], %40 {strides = array<i32>} : memref<36x256xf32, #tpu.memory_space<vmem>>, vector<4x256xf32>,
    %c239_i32 = arith.constant 239 : i32
    %42 = tpu.dynamic_rotate %2 by %c239_i32 dim 1 : vector<4x256xf32>, i32 -> vector<4x256xf32>
    %43 = vector.extract_strided_slice %0 {offsets = [8, 0], sizes = [1, 256], strides = [1, 1]} : vector<9x256xf32> to vector<1x256xf32>
    %44 = vector.broadcast %43 : vector<1x256xf32> to vector<4x256xf32>
    %45 = arith.mulf %42, %44 : vector<4x256xf32>
    %c32 = arith.constant 32 : index
    %c0_13 = arith.constant 0 : index
    %46 = vector.load %arg8[%c32, %c0_13] : memref<36x256xf32, #tpu.memory_space<vmem>>, vector<4x256xf32>
    tpu.vector_store %arg8[%c32, %c0_13], %45 {strides = array<i32>} : memref<36x256xf32, #tpu.memory_space<vmem>>, vector<4x256xf32>,
    %c0_14 = arith.constant 0 : index
    %c0_15 = arith.constant 0 : index
    %47 = vector.load %arg2[%c0_14, %c0_15] : memref<4x36xf32, #tpu.memory_space<vmem>>, vector<4x36xf32>
    %c0_16 = arith.constant 0 : index
    %c0_17 = arith.constant 0 : index
    %48 = vector.load %arg8[%c0_16, %c0_17] : memref<36x256xf32, #tpu.memory_space<vmem>>, vector<36x256xf32>
    %cst = arith.constant dense<0.000000e+00> : vector<4x256xf32>
    %49 = tpu.matmul %47, %48, %cst {dimension_numbers = #tpu.dot_dimension_numbers<[1], [0], [0], [1], [0, 0, 1, 1], [], []>} : vector<4x36xf32>, vector<36x256xf32>, vector<4x256xf32> -> vector<4x256xf32>
    %c0_18 = arith.constant 0 : index
    %c0_19 = arith.constant 0 : index
    %50 = vector.load %arg3[%c0_18, %c0_19] : memref<4x1xf32, #tpu.memory_space<vmem>>, vector<4x1xf32>
    %51 = vector.broadcast %50 : vector<4x1xf32> to vector<4x256xf32>
    %52 = arith.addf %49, %51 : vector<4x256xf32>
    %cst_20 = arith.constant 0.000000e+00 : f32
    %53 = vector.broadcast %cst_20 : f32 to vector<4x256xf32>
    %54 = arith.maximumf %52, %53 : vector<4x256xf32>
    %c17_i32_21 = arith.constant 17 : i32
    %55 = tpu.dynamic_rotate %54 by %c17_i32_21 dim 1 : vector<4x256xf32>, i32 -> vector<4x256xf32>
    %56 = vector.extract_strided_slice %0 {offsets = [0, 0], sizes = [1, 256], strides = [1, 1]} : vector<9x256xf32> to vector<1x256xf32>
    %57 = vector.broadcast %56 : vector<1x256xf32> to vector<4x256xf32>
    %58 = arith.mulf %55, %57 : vector<4x256xf32>
    %c0_22 = arith.constant 0 : index
    %c0_23 = arith.constant 0 : index
    %59 = vector.load %arg8[%c0_22, %c0_23] : memref<36x256xf32, #tpu.memory_space<vmem>>, vector<4x256xf32>
    tpu.vector_store %arg8[%c0_22, %c0_23], %58 {strides = array<i32>} : memref<36x256xf32, #tpu.memory_space<vmem>>, vector<4x256xf32>,
    %c16_i32_24 = arith.constant 16 : i32
    %60 = tpu.dynamic_rotate %54 by %c16_i32_24 dim 1 : vector<4x256xf32>, i32 -> vector<4x256xf32>
    %61 = vector.extract_strided_slice %0 {offsets = [1, 0], sizes = [1, 256], strides = [1, 1]} : vector<9x256xf32> to vector<1x256xf32>
    %62 = vector.broadcast %61 : vector<1x256xf32> to vector<4x256xf32>
    %63 = arith.mulf %60, %62 : vector<4x256xf32>
    %c4_25 = arith.constant 4 : index
    %c0_26 = arith.constant 0 : index
    %64 = vector.load %arg8[%c4_25, %c0_26] : memref<36x256xf32, #tpu.memory_space<vmem>>, vector<4x256xf32>
    tpu.vector_store %arg8[%c4_25, %c0_26], %63 {strides = array<i32>} : memref<36x256xf32, #tpu.memory_space<vmem>>, vector<4x256xf32>,
    %c15_i32_27 = arith.constant 15 : i32
    %65 = tpu.dynamic_rotate %54 by %c15_i32_27 dim 1 : vector<4x256xf32>, i32 -> vector<4x256xf32>
    %66 = vector.extract_strided_slice %0 {offsets = [2, 0], sizes = [1, 256], strides = [1, 1]} : vector<9x256xf32> to vector<1x256xf32>
    %67 = vector.broadcast %66 : vector<1x256xf32> to vector<4x256xf32>
    %68 = arith.mulf %65, %67 : vector<4x256xf32>
    %c8_28 = arith.constant 8 : index
    %c0_29 = arith.constant 0 : index
    %69 = vector.load %arg8[%c8_28, %c0_29] : memref<36x256xf32, #tpu.memory_space<vmem>>, vector<4x256xf32>
    tpu.vector_store %arg8[%c8_28, %c0_29], %68 {strides = array<i32>} : memref<36x256xf32, #tpu.memory_space<vmem>>, vector<4x256xf32>,
    %c1_i32_30 = arith.constant 1 : i32
    %70 = tpu.dynamic_rotate %54 by %c1_i32_30 dim 1 : vector<4x256xf32>, i32 -> vector<4x256xf32>
    %71 = vector.extract_strided_slice %0 {offsets = [3, 0], sizes = [1, 256], strides = [1, 1]} : vector<9x256xf32> to vector<1x256xf32>
    %72 = vector.broadcast %71 : vector<1x256xf32> to vector<4x256xf32>
    %73 = arith.mulf %70, %72 : vector<4x256xf32>
    %c12_31 = arith.constant 12 : index
    %c0_32 = arith.constant 0 : index
    %74 = vector.load %arg8[%c12_31, %c0_32] : memref<36x256xf32, #tpu.memory_space<vmem>>, vector<4x256xf32>
    tpu.vector_store %arg8[%c12_31, %c0_32], %73 {strides = array<i32>} : memref<36x256xf32, #tpu.memory_space<vmem>>, vector<4x256xf32>,
    %75 = vector.extract_strided_slice %0 {offsets = [4, 0], sizes = [1, 256], strides = [1, 1]} : vector<9x256xf32> to vector<1x256xf32>
    %76 = vector.broadcast %75 : vector<1x256xf32> to vector<4x256xf32>
    %77 = arith.mulf %54, %76 : vector<4x256xf32>
    %c16_33 = arith.constant 16 : index
    %c0_34 = arith.constant 0 : index
    %78 = vector.load %arg8[%c16_33, %c0_34] : memref<36x256xf32, #tpu.memory_space<vmem>>, vector<4x256xf32>
    tpu.vector_store %arg8[%c16_33, %c0_34], %77 {strides = array<i32>} : memref<36x256xf32, #tpu.memory_space<vmem>>, vector<4x256xf32>,
    %c255_i32_35 = arith.constant 255 : i32
    %79 = tpu.dynamic_rotate %54 by %c255_i32_35 dim 1 : vector<4x256xf32>, i32 -> vector<4x256xf32>
    %80 = vector.extract_strided_slice %0 {offsets = [5, 0], sizes = [1, 256], strides = [1, 1]} : vector<9x256xf32> to vector<1x256xf32>
    %81 = vector.broadcast %80 : vector<1x256xf32> to vector<4x256xf32>
    %82 = arith.mulf %79, %81 : vector<4x256xf32>
    %c20_36 = arith.constant 20 : index
    %c0_37 = arith.constant 0 : index
    %83 = vector.load %arg8[%c20_36, %c0_37] : memref<36x256xf32, #tpu.memory_space<vmem>>, vector<4x256xf32>
    tpu.vector_store %arg8[%c20_36, %c0_37], %82 {strides = array<i32>} : memref<36x256xf32, #tpu.memory_space<vmem>>, vector<4x256xf32>,
    %c241_i32_38 = arith.constant 241 : i32
    %84 = tpu.dynamic_rotate %54 by %c241_i32_38 dim 1 : vector<4x256xf32>, i32 -> vector<4x256xf32>
    %85 = vector.extract_strided_slice %0 {offsets = [6, 0], sizes = [1, 256], strides = [1, 1]} : vector<9x256xf32> to vector<1x256xf32>
    %86 = vector.broadcast %85 : vector<1x256xf32> to vector<4x256xf32>
    %87 = arith.mulf %84, %86 : vector<4x256xf32>
    %c24_39 = arith.constant 24 : index
    %c0_40 = arith.constant 0 : index
    %88 = vector.load %arg8[%c24_39, %c0_40] : memref<36x256xf32, #tpu.memory_space<vmem>>, vector<4x256xf32>
    tpu.vector_store %arg8[%c24_39, %c0_40], %87 {strides = array<i32>} : memref<36x256xf32, #tpu.memory_space<vmem>>, vector<4x256xf32>,
    %c240_i32_41 = arith.constant 240 : i32
    %89 = tpu.dynamic_rotate %54 by %c240_i32_41 dim 1 : vector<4x256xf32>, i32 -> vector<4x256xf32>
    %90 = vector.extract_strided_slice %0 {offsets = [7, 0], sizes = [1, 256], strides = [1, 1]} : vector<9x256xf32> to vector<1x256xf32>
    %91 = vector.broadcast %90 : vector<1x256xf32> to vector<4x256xf32>
    %92 = arith.mulf %89, %91 : vector<4x256xf32>
    %c28_42 = arith.constant 28 : index
    %c0_43 = arith.constant 0 : index
    %93 = vector.load %arg8[%c28_42, %c0_43] : memref<36x256xf32, #tpu.memory_space<vmem>>, vector<4x256xf32>
    tpu.vector_store %arg8[%c28_42, %c0_43], %92 {strides = array<i32>} : memref<36x256xf32, #tpu.memory_space<vmem>>, vector<4x256xf32>,
    %c239_i32_44 = arith.constant 239 : i32
    %94 = tpu.dynamic_rotate %54 by %c239_i32_44 dim 1 : vector<4x256xf32>, i32 -> vector<4x256xf32>
    %95 = vector.extract_strided_slice %0 {offsets = [8, 0], sizes = [1, 256], strides = [1, 1]} : vector<9x256xf32> to vector<1x256xf32>
    %96 = vector.broadcast %95 : vector<1x256xf32> to vector<4x256xf32>
    %97 = arith.mulf %94, %96 : vector<4x256xf32>
    %c32_45 = arith.constant 32 : index
    %c0_46 = arith.constant 0 : index
    %98 = vector.load %arg8[%c32_45, %c0_46] : memref<36x256xf32, #tpu.memory_space<vmem>>, vector<4x256xf32>
    tpu.vector_store %arg8[%c32_45, %c0_46], %97 {strides = array<i32>} : memref<36x256xf32, #tpu.memory_space<vmem>>, vector<4x256xf32>,
    %c0_47 = arith.constant 0 : index
    %c0_48 = arith.constant 0 : index
    %99 = vector.load %arg4[%c0_47, %c0_48] : memref<4x36xf32, #tpu.memory_space<vmem>>, vector<4x36xf32>
    %c0_49 = arith.constant 0 : index
    %c0_50 = arith.constant 0 : index
    %100 = vector.load %arg8[%c0_49, %c0_50] : memref<36x256xf32, #tpu.memory_space<vmem>>, vector<36x256xf32>
    %cst_51 = arith.constant dense<0.000000e+00> : vector<4x256xf32>
    %101 = tpu.matmul %99, %100, %cst_51 {dimension_numbers = #tpu.dot_dimension_numbers<[1], [0], [0], [1], [0, 0, 1, 1], [], []>} : vector<4x36xf32>, vector<36x256xf32>, vector<4x256xf32> -> vector<4x256xf32>
    %c0_52 = arith.constant 0 : index
    %c0_53 = arith.constant 0 : index
    %102 = vector.load %arg5[%c0_52, %c0_53] : memref<4x1xf32, #tpu.memory_space<vmem>>, vector<4x1xf32>
    %103 = vector.broadcast %102 : vector<4x1xf32> to vector<4x256xf32>
    %104 = arith.addf %101, %103 : vector<4x256xf32>
    %c0_54 = arith.constant 0 : index
    %c0_55 = arith.constant 0 : index
    %c0_56 = arith.constant 0 : index
    %105 = vector.load %arg7[%c0_54, %c0_55, %c0_56] : memref<1x4x256xf32, #tpu.memory_space<vmem>>, vector<1x4x256xf32>
    %106 = vector.shape_cast %105 : vector<1x4x256xf32> to vector<4x256xf32>
    %107 = vector.shape_cast %104 : vector<4x256xf32> to vector<1x4x256xf32>
    tpu.vector_store %arg7[%c0_54, %c0_55, %c0_56], %107 {strides = array<i32>} : memref<1x4x256xf32, #tpu.memory_space<vmem>>, vector<1x4x256xf32>,
    return
  }
  func.func @transform_0(%arg0: i32) -> (i32, i32, i32) {
    %c0_i32 = arith.constant 0 : i32
    %c0_i32_0 = arith.constant 0 : i32
    %c0_i32_1 = arith.constant 0 : i32
    return %arg0, %c0_i32, %c0_i32_0 : i32, i32, i32
  }
  func.func @transform_1(%arg0: i32) -> (i32, i32) {
    %c0_i32 = arith.constant 0 : i32
    %c0_i32_0 = arith.constant 0 : i32
    %c0_i32_1 = arith.constant 0 : i32
    return %c0_i32, %c0_i32_0 : i32, i32
  }
  func.func @transform_2(%arg0: i32) -> (i32, i32) {
    %c0_i32 = arith.constant 0 : i32
    %c0_i32_0 = arith.constant 0 : i32
    %c0_i32_1 = arith.constant 0 : i32
    return %c0_i32, %c0_i32_0 : i32, i32
  }
  func.func @transform_3(%arg0: i32) -> (i32, i32) {
    %c0_i32 = arith.constant 0 : i32
    %c0_i32_0 = arith.constant 0 : i32
    %c0_i32_1 = arith.constant 0 : i32
    return %c0_i32, %c0_i32_0 : i32, i32
  }
  func.func @transform_4(%arg0: i32) -> (i32, i32) {
    %c0_i32 = arith.constant 0 : i32
    %c0_i32_0 = arith.constant 0 : i32
    %c0_i32_1 = arith.constant 0 : i32
    return %c0_i32, %c0_i32_0 : i32, i32
  }
  func.func @transform_5(%arg0: i32) -> (i32, i32) {
    %c0_i32 = arith.constant 0 : i32
    %c0_i32_0 = arith.constant 0 : i32
    %c0_i32_1 = arith.constant 0 : i32
    return %c0_i32, %c0_i32_0 : i32, i32
  }
  func.func @transform_6(%arg0: i32) -> (i32, i32, i32) {
    %c0_i32 = arith.constant 0 : i32
    %c0_i32_0 = arith.constant 0 : i32
    %c0_i32_1 = arith.constant 0 : i32
    return %arg0, %c0_i32, %c0_i32_0 : i32, i32, i32
  }
}

</mosaic_0001>

<llo_original>
// kernel: tpu_custom_call.1
$region0: #{tpu_custom_call.1}
  #allocation0 [shape = 'u32[]', space=smem, size = 0x4, offset = 0x4, fixed_abs, tag = 'smem constant byte address 0x4 - core index']
  #allocation1 [shape = 'u32[144,128]{1,0:T(1,128)}', space=vmem, size = 0x12000, scoped, tag = 'internal scratch']
  #allocation2 [shape = 'f32[36,256]{1,0:T(8,128)}', space=vmem, size = 0xa000, scoped, tag = 'scratch operand']
  %s0 = inlined_call_operand.hbm [shape: f32[2,4,256], index: 0, kind: input, shape index: {}]
  %s1 = inlined_call_operand.vmem [shape: f32[4,36], index: 1, kind: input, shape index: {}]
  %s2 = inlined_call_operand.vmem [shape: f32[4,1], index: 2, kind: input, shape index: {}]
  %s3 = inlined_call_operand.vmem [shape: f32[4,36], index: 3, kind: input, shape index: {}]
  %s4 = inlined_call_operand.vmem [shape: f32[4,1], index: 4, kind: input, shape index: {}]
  %s5 = inlined_call_operand.hbm [shape: f32[9,256], index: 5, kind: input, shape index: {}]
  %s6 = inlined_call_operand.hbm [shape: f32[2,4,256], index: 6, kind: output, shape index: {}]
  %s7 = sld [smem:[#allocation0]]
  $region65: #{tpu_custom_call.1} parent=0
    _
  %s9 = ssub.s32 1, %s7
  %s10 = scalar_select 0, %s9, %s7
  $region1: #{tpu_custom_call.1} parent=0
    #allocation3 [shape = 'u8[8192]{0}', space=vmem, size = 0x2000, scoped, tag = 'input window, operand 0']
    #allocation4 [shape = 's32[2]{0}', space=sflag, size = 0x8, scoped, tag = 'scoped memory for tpu_custom_call.1']
    #allocation5 [shape = 's32[2]{0}', space=sflag, size = 0x8, scoped, tag = 'scoped memory for tpu_custom_call.1']
    #allocation6 [shape = 'u8[16384]{0}', space=vmem, size = 0x4000, scoped, tag = 'input window, operand 5, single buffered']
    #allocation7 [shape = 's32[1]{0}', space=sflag, size = 0x4, scoped, tag = 'scoped memory for tpu_custom_call.1']
    #allocation8 [shape = 'u8[8192]{0}', space=vmem, size = 0x2000, scoped, tag = 'output window, operand 0']
    %11 = vsyncpa [#allocation4], 0
    %s12 = scalar_lea.sflag [#allocation4], 1
    %13 = vsyncpa %s12, 0
    %14 = vsyncpa [#allocation7], 0
    %15 = vsyncpa [#allocation5], 0
    %s16 = scalar_lea.sflag [#allocation5], 1
    %17 = vsyncpa %s16, 0
    loop: start=0, step=1, limit=4
    $region2: #{tpu_custom_call.1} parent=1 // loop_pre_header
      _
    $region3: #{tpu_custom_call.1} parent=1 // loop_header
      %s19 = sphi 0, %s23
      %p20 = scmp.ge.s32.totalorder %s19, 4
      %s29 = sphi 0, %s31
      %s32 = sphi 0, %s29
      %s33 = sphi 0, %s32
      %s49 = sphi 0, %s33
      %s53 = sphi 0, %s53
      %s55 = sphi 0, %s53
      %s56 = sphi 0, %s55
      %s70 = sphi 0, %s56
      %s74 = sphi 0, %s74
      %s76 = sphi 0, %s74
      %s77 = sphi 0, %s76
      %s91 = sphi 0, %s77
      %s95 = sphi 0, %s95
      %s97 = sphi 0, %s95
      %s98 = sphi 0, %s97
      %s112 = sphi 0, %s98
      %s116 = sphi 0, %s116
      %s118 = sphi 0, %s116
      %s119 = sphi 0, %s118
      %s133 = sphi 0, %s119
      %s137 = sphi 0, %s137
      %s139 = sphi 0, %s137
      %s140 = sphi 0, %s139
      %s154 = sphi 0, %s140
      %s160 = sphi 0, %s162
      %s163 = sphi 0, %s160
      %s164 = sphi 0, %s163
      %s180 = sphi 0, %s164
    $region4: #{tpu_custom_call.1} parent=1 // loop_header_branch
      %22 = sbr.rel (%p20) target = $region8
    $region5: #{tpu_custom_call.1} parent=1 // loop_body
      %s24 = ssub.s32 %s19, 1
      %s25 = ssub.s32 %s19, 2
      %s26 = sadd.s32 %s19, 1
      %s27 = ssub.s32 %s19, %s26
      %p28 = scmp.eq.s32.totalorder %s27, 0
      %s30 = sadd.s32 %s29, 1
      %s31 = scalar_select %p28, %s29, %s30
      %p34 = pneg %p28
      %p35 = scmp.eq.s32.totalorder %s19, 1
      %p36 = por %p34, %p35
      %p37 = scmp.ne.s32.totalorder %s29, %s32
      %p38 = scmp.eq.s32.totalorder %s19, 0
      %p39 = por %p37, %p38
      %p40 = scmp.ne.s32.totalorder %s29, %s32
      %p41 = scmp.eq.s32.totalorder %s24, 1
      %p42 = por %p40, %p41
      %p43 = scmp.ne.s32.totalorder %s32, %s33
      %p44 = scmp.eq.s32.totalorder %s24, 0
      %p45 = por %p43, %p44
      %p46 = scmp.ne.s32.totalorder %s32, %s33
      %p47 = scmp.eq.s32.totalorder %s25, 1
      %p48 = por %p46, %p47
      %p50 = scmp.ne.s32.totalorder %s33, %s49
      %p51 = scmp.eq.s32.totalorder %s25, 0
      %p52 = por %p50, %p51
      %s54 = sadd.s32 %s53, 1
      %p57 = scmp.eq.s32.totalorder %s19, 1
      %p58 = scmp.ne.s32.totalorder %s53, %s55
      %p59 = scmp.eq.s32.totalorder %s19, 0
      %p60 = por %p58, %p59
      %p61 = scmp.ne.s32.totalorder %s53, %s55
      %p62 = scmp.eq.s32.totalorder %s24, 1
      %p63 = por %p61, %p62
      %p64 = scmp.ne.s32.totalorder %s55, %s56
      %p65 = scmp.eq.s32.totalorder %s24, 0
      %p66 = por %p64, %p65
      %p67 = scmp.ne.s32.totalorder %s55, %s56
      %p68 = scmp.eq.s32.totalorder %s25, 1
      %p69 = por %p67, %p68
      %p71 = scmp.ne.s32.totalorder %s56, %s70
      %p72 = scmp.eq.s32.totalorder %s25, 0
      %p73 = por %p71, %p72
      %s75 = sadd.s32 %s74, 1
      %p78 = scmp.eq.s32.totalorder %s19, 1
      %p79 = scmp.ne.s32.totalorder %s74, %s76
      %p80 = scmp.eq.s32.totalorder %s19, 0
      %p81 = por %p79, %p80
      %p82 = scmp.ne.s32.totalorder %s74, %s76
      %p83 = scmp.eq.s32.totalorder %s24, 1
      %p84 = por %p82, %p83
      %p85 = scmp.ne.s32.totalorder %s76, %s77
      %p86 = scmp.eq.s32.totalorder %s24, 0
      %p87 = por %p85, %p86
      %p88 = scmp.ne.s32.totalorder %s76, %s77
      %p89 = scmp.eq.s32.totalorder %s25, 1
      %p90 = por %p88, %p89
      %p92 = scmp.ne.s32.totalorder %s77, %s91
      %p93 = scmp.eq.s32.totalorder %s25, 0
      %p94 = por %p92, %p93
      %s96 = sadd.s32 %s95, 1
      %p99 = scmp.eq.s32.totalorder %s19, 1
      %p100 = scmp.ne.s32.totalorder %s95, %s97
      %p101 = scmp.eq.s32.totalorder %s19, 0
      %p102 = por %p100, %p101
      %p103 = scmp.ne.s32.totalorder %s95, %s97
      %p104 = scmp.eq.s32.totalorder %s24, 1
      %p105 = por %p103, %p104
      %p106 = scmp.ne.s32.totalorder %s97, %s98
      %p107 = scmp.eq.s32.totalorder %s24, 0
      %p108 = por %p106, %p107
      %p109 = scmp.ne.s32.totalorder %s97, %s98
      %p110 = scmp.eq.s32.totalorder %s25, 1
      %p111 = por %p109, %p110
      %p113 = scmp.ne.s32.totalorder %s98, %s112
      %p114 = scmp.eq.s32.totalorder %s25, 0
      %p115 = por %p113, %p114
      %s117 = sadd.s32 %s116, 1
      %p120 = scmp.eq.s32.totalorder %s19, 1
      %p121 = scmp.ne.s32.totalorder %s116, %s118
      %p122 = scmp.eq.s32.totalorder %s19, 0
      %p123 = por %p121, %p122
      %p124 = scmp.ne.s32.totalorder %s116, %s118
      %p125 = scmp.eq.s32.totalorder %s24, 1
      %p126 = por %p124, %p125
      %p127 = scmp.ne.s32.totalorder %s118, %s119
      %p128 = scmp.eq.s32.totalorder %s24, 0
      %p129 = por %p127, %p128
      %p130 = scmp.ne.s32.totalorder %s118, %s119
      %p131 = scmp.eq.s32.totalorder %s25, 1
      %p132 = por %p130, %p131
      %p134 = scmp.ne.s32.totalorder %s119, %s133
      %p135 = scmp.eq.s32.totalorder %s25, 0
      %p136 = por %p134, %p135
      %s138 = sadd.s32 %s137, 1
      %p141 = scmp.eq.s32.totalorder %s19, 1
      %p142 = scmp.ne.s32.totalorder %s137, %s139
      %p143 = scmp.eq.s32.totalorder %s19, 0
      %p144 = por %p142, %p143
      %p145 = scmp.ne.s32.totalorder %s137, %s139
      %p146 = scmp.eq.s32.totalorder %s24, 1
      %p147 = por %p145, %p146
      %p148 = scmp.ne.s32.totalorder %s139, %s140
      %p149 = scmp.eq.s32.totalorder %s24, 0
      %p150 = por %p148, %p149
      %p151 = scmp.ne.s32.totalorder %s139, %s140
      %p152 = scmp.eq.s32.totalorder %s25, 1
      %p153 = por %p151, %p152
      %p155 = scmp.ne.s32.totalorder %s140, %s154
      %p156 = scmp.eq.s32.totalorder %s25, 0
      %p157 = por %p155, %p156
      %s158 = ssub.s32 %s19, %s26
      %p159 = scmp.eq.s32.totalorder %s158, 0
      %s161 = sadd.s32 %s160, 1
      %s162 = scalar_select %p159, %s160, %s161
      %p165 = pneg %p159
      %p166 = scmp.eq.s32.totalorder %s19, 1
      %p167 = por %p165, %p166
      %p168 = scmp.ne.s32.totalorder %s160, %s163
      %p169 = scmp.eq.s32.totalorder %s19, 0
      %p170 = por %p168, %p169
      %p171 = scmp.ne.s32.totalorder %s160, %s163
      %p172 = scmp.eq.s32.totalorder %s24, 1
      %p173 = por %p171, %p172
      %p174 = scmp.ne.s32.totalorder %s163, %s164
      %p175 = scmp.eq.s32.totalorder %s24, 0
      %p176 = por %p174, %p175
      %p177 = scmp.ne.s32.totalorder %s163, %s164
      %p178 = scmp.eq.s32.totalorder %s25, 1
      %p179 = por %p177, %p178
      %p181 = scmp.ne.s32.totalorder %s164, %s180
      %p182 = scmp.eq.s32.totalorder %s25, 0
      %p183 = por %p181, %p182
      %p184 = scmp.le.s32.totalorder 1, %s19
      %p185 = scmp.lt.s32.totalorder %s19, 3
      %p186 = pnand %p184, %p185
      %p187 = pneg %p186
      // Predicated region
      $region9: #{tpu_custom_call.1} parent=5 // pred_check
        _
      $region10: #{tpu_custom_call.1} parent=5 // pred_check_branch
        %189 = sbr.rel (%p186) target = $region12
      $region11: #{tpu_custom_call.1} parent=5 // pred_region
        %s190 = ssub.s32 %s19, 1
        // Predicated region
        $region13: #{tpu_custom_call.1} parent=11 // pred_check
          %p191 = pneg %p66
        $region14: #{tpu_custom_call.1} parent=11 // pred_check_branch
          %193 = sbr.rel (%p191) target = $region16
        $region15: #{tpu_custom_call.1} parent=11 // pred_region
          _
        $region16: #{tpu_custom_call.1} parent=11 // pred_fallthru
          _
        // Predicated region
        $region17: #{tpu_custom_call.1} parent=11 // pred_check
          %p194 = pneg %p87
        $region18: #{tpu_custom_call.1} parent=11 // pred_check_branch
          %196 = sbr.rel (%p194) target = $region20
        $region19: #{tpu_custom_call.1} parent=11 // pred_region
          _
        $region20: #{tpu_custom_call.1} parent=11 // pred_fallthru
          _
        // Predicated region
        $region21: #{tpu_custom_call.1} parent=11 // pred_check
          %p197 = pneg %p108
        $region22: #{tpu_custom_call.1} parent=11 // pred_check_branch
          %199 = sbr.rel (%p197) target = $region24
        $region23: #{tpu_custom_call.1} parent=11 // pred_region
          _
        $region24: #{tpu_custom_call.1} parent=11 // pred_fallthru
          _
        // Predicated region
        $region25: #{tpu_custom_call.1} parent=11 // pred_check
          %p200 = pneg %p129
        $region26: #{tpu_custom_call.1} parent=11 // pred_check_branch
          %202 = sbr.rel (%p200) target = $region28
        $region27: #{tpu_custom_call.1} parent=11 // pred_region
          _
        $region28: #{tpu_custom_call.1} parent=11 // pred_fallthru
          _
        // Predicated region
        $region29: #{tpu_custom_call.1} parent=11 // pred_check
          %p203 = pneg %p150
        $region30: #{tpu_custom_call.1} parent=11 // pred_check_branch
          %205 = sbr.rel (%p203) target = $region32
        $region31: #{tpu_custom_call.1} parent=11 // pred_region
          %s207 = ssub.s32 512, 512
          %208 = vsyncadd [#allocation7], %s207
          %s209 = sshll.u32 [#allocation6], 4
          %s210 = int_to_ptr.vmem [resolvable:$true] %s209
          %215 = dma.hbm_to_vmem [thread:$0]  %s5, 512, %s210, [#allocation7], 256, 256, 16
        $region32: #{tpu_custom_call.1} parent=11 // pred_fallthru
          _
      $region12: #{tpu_custom_call.1} parent=5 // pred_fallthru
        _
      %p216 = scmp.lt.s32.totalorder %s19, 2
      // Predicated region
      $region33: #{tpu_custom_call.1} parent=5 // pred_check
        %p217 = pneg %p216
      $region34: #{tpu_custom_call.1} parent=5 // pred_check_branch
        %219 = sbr.rel (%p217) target = $region36
      $region35: #{tpu_custom_call.1} parent=5 // pred_region
        // Predicated region
        $region37: #{tpu_custom_call.1} parent=35 // pred_check
          %p220 = pneg %p39
        $region38: #{tpu_custom_call.1} parent=35 // pred_check_branch
          %222 = sbr.rel (%p220) target = $region40
        $region39: #{tpu_custom_call.1} parent=35 // pred_region
          %s223 = sand.u32 %s29, 1
          %s224 = scalar_lea.sflag [#allocation4], %s223
          %s225 = sand.u32 %s29, 1
          %s226 = smul.addr %s225, 8
          %s227 = scalar_lea.vmem [#allocation3], %s226
          %s229 = ssub.s32 128, 128
          %230 = vsyncadd %s224, %s229
          %s231 = smul.addr %s19, 2
          %s232 = smul.addr %s231, 64
          %s233 = scalar_lea.hbm %s0, %s232
          %s235 = sshll.u32 %s227, 4
          %s236 = int_to_ptr.vmem [resolvable:$true] %s235
          %238 = dma.hbm_to_vmem [thread:$0]  %s233, 128, %s236, %s224
        $region40: #{tpu_custom_call.1} parent=35 // pred_fallthru
          _
      $region36: #{tpu_custom_call.1} parent=5 // pred_fallthru
        _
      %p239 = scmp.le.s32.totalorder 1, %s19
      %p240 = scmp.lt.s32.totalorder %s19, 3
      %p241 = pnand %p239, %p240
      %p242 = pneg %p241
      // Predicated region
      $region41: #{tpu_custom_call.1} parent=5 // pred_check
        _
      $region42: #{tpu_custom_call.1} parent=5 // pred_check_branch
        %244 = sbr.rel (%p241) target = $region44
      $region43: #{tpu_custom_call.1} parent=5 // pred_region
        %s245 = ssub.s32 %s19, 1
        %s246 = sand.u32 %s32, 1
        %s247 = scalar_lea.sflag [#allocation4], %s246
        %s248 = sand.u32 %s32, 1
        %s249 = smul.addr %s248, 8
        %s250 = scalar_lea.vmem [#allocation3], %s249
        // Predicated region
        $region45: #{tpu_custom_call.1} parent=43 // pred_check
          %p251 = pneg %p45
        $region46: #{tpu_custom_call.1} parent=43 // pred_check_branch
          %253 = sbr.rel (%p251) target = $region48
        $region47: #{tpu_custom_call.1} parent=43 // pred_region
          %254 = dma.done %s247, 128
        $region48: #{tpu_custom_call.1} parent=43 // pred_fallthru
          _
        // Predicated region
        $region49: #{tpu_custom_call.1} parent=43 // pred_check
          %p255 = pneg %p150
        $region50: #{tpu_custom_call.1} parent=43 // pred_check_branch
          %257 = sbr.rel (%p255) target = $region52
        $region51: #{tpu_custom_call.1} parent=43 // pred_region
          %258 = dma.done [#allocation7], 512
        $region52: #{tpu_custom_call.1} parent=43 // pred_fallthru
          _
        %s259 = sand.u32 %s32, 1
        %s260 = scalar_lea.sflag [#allocation4], %s259
        %s261 = sand.u32 %s32, 1
        %s262 = smul.addr %s261, 8
        %s263 = scalar_lea.vmem [#allocation3], %s262
        %p264 = pneg %p45
        %p265 = pneg %p42
        %p266 = pneg %p66
        %p267 = pneg %p63
        %p268 = pneg %p87
        %p269 = pneg %p84
        %p270 = pneg %p108
        %p271 = pneg %p105
        %p272 = pneg %p129
        %p273 = pneg %p126
        %p274 = pneg %p150
        %p275 = pneg %p147
        %p276 = pneg %p176
        %p277 = pneg %p173
        %s278 = sand.u32 %s163, 1
        %s279 = scalar_lea.sflag [#allocation5], %s278
        %s280 = sand.u32 %s163, 1
        %s281 = smul.addr %s280, 8
        %s282 = scalar_lea.vmem [#allocation8], %s281
        %v283 = vld [vmem:[#allocation6] sm:$0xff]
        %v284 = vld [vmem:[#allocation6 + $0x8] sm:$0xff]
        %v285 = vld [vmem:[#allocation6 + $0x10] sm:$0x1]
        %v286 = vld [vmem:[#allocation6 + $0x18] sm:$0x1]
        %v287 = vld [vmem:[%s250] sm:$0xff]
        %v289 = vcombine.high %v287, %v287
        %291 = vrot.lane.b32.xlu0 %v287, 17
        %v292 = vpop.permute.xlu0 %291
        %293 = vrot.lane.b32.xlu0 %v289, 17
        %v294 = vpop.permute.xlu0 %293
        %v295 = vlaneseq
        %v296 = vand.u32 %v295, 127
        %vm297 = vcmp.lt.s32.totalorder %v296, 17
        %v298 = vsel %vm297, %v292, %v294
        %v299 = vsel %vm297, %v294, %v292
        %v300 = vlaneseq
        %v301 = vshrl.u32 %v300, 7
        %v302 = vsub.s32 0, %v301
        %v303 = vrot.slane %v283, %v302
        %v304 = vlaneseq
        %v305 = vshrl.u32 %v304, 7
        %v306 = vsub.s32 0, %v305
        %v307 = vrot.slane %v284, %v306
        %v308 = vmul.f32 %v299, %v303
        %v309 = vmul.f32 %v298, %v307
        %310 = vst [vmem:[#allocation2] sm:$0xf] %v308
        %311 = vst [vmem:[#allocation2 + $0x8] sm:$0xf] %v309
        %312 = vrot.lane.b32.xlu0 %v287, 16
        %v313 = vpop.permute.xlu0 %312
        %314 = vrot.lane.b32.xlu0 %v289, 16
        %v315 = vpop.permute.xlu0 %314
        %vm316 = vcmp.lt.s32.totalorder %v296, 16
        %v317 = vsel %vm316, %v313, %v315
        %v318 = vsel %vm316, %v315, %v313
        %v319 = vlaneseq
        %v320 = vshrl.u32 %v319, 7
        %v321 = vsub.s32 1, %v320
        %v322 = vrot.slane %v283, %v321
        %v323 = vlaneseq
        %v324 = vshrl.u32 %v323, 7
        %v325 = vsub.s32 1, %v324
        %v326 = vrot.slane %v284, %v325
        %v327 = vmul.f32 %v318, %v322
        %v328 = vmul.f32 %v317, %v326
        %v331 = vrot.slane %v327, 4
        %v332 = vrot.slane %v328, 4
        %335 = vst [vmem:[#allocation2] sm:$0xf0] %v331
        %336 = vst [vmem:[#allocation2 + $0x8] sm:$0xf0] %v332
        %337 = vrot.lane.b32.xlu0 %v287, 15
        %v338 = vpop.permute.xlu0 %337
        %339 = vrot.lane.b32.xlu0 %v289, 15
        %v340 = vpop.permute.xlu0 %339
        %vm341 = vcmp.lt.s32.totalorder %v296, 15
        %v342 = vsel %vm341, %v338, %v340
        %v343 = vsel %vm341, %v340, %v338
        %v344 = vlaneseq
        %v345 = vshrl.u32 %v344, 7
        %v346 = vsub.s32 2, %v345
        %v347 = vrot.slane %v283, %v346
        %v348 = vlaneseq
        %v349 = vshrl.u32 %v348, 7
        %v350 = vsub.s32 2, %v349
        %v351 = vrot.slane %v284, %v350
        %v352 = vmul.f32 %v343, %v347
        %v353 = vmul.f32 %v342, %v351
        %354 = vst [vmem:[#allocation2 + $0x10] sm:$0xf] %v352
        %355 = vst [vmem:[#allocation2 + $0x18] sm:$0xf] %v353
        %356 = vrot.lane.b32.xlu0 %v287, 1
        %v357 = vpop.permute.xlu0 %356
        %358 = vrot.lane.b32.xlu0 %v289, 1
        %v359 = vpop.permute.xlu0 %358
        %vm360 = vcmp.lt.s32.totalorder %v296, 1
        %v361 = vsel %vm360, %v357, %v359
        %v362 = vsel %vm360, %v359, %v357
        %v363 = vlaneseq
        %v364 = vshrl.u32 %v363, 7
        %v365 = vsub.s32 3, %v364
        %v366 = vrot.slane %v283, %v365
        %v367 = vlaneseq
        %v368 = vshrl.u32 %v367, 7
        %v369 = vsub.s32 3, %v368
        %v370 = vrot.slane %v284, %v369
        %v371 = vmul.f32 %v362, %v366
        %v372 = vmul.f32 %v361, %v370
        %v375 = vrot.slane %v371, 4
        %v376 = vrot.slane %v372, 4
        %379 = vst [vmem:[#allocation2 + $0x10] sm:$0xf0] %v375
        %380 = vst [vmem:[#allocation2 + $0x18] sm:$0xf0] %v376
        %v381 = vlaneseq
        %v382 = vshrl.u32 %v381, 7
        %v383 = vsub.s32 4, %v382
        %v384 = vrot.slane %v283, %v383
        %v385 = vlaneseq
        %v386 = vshrl.u32 %v385, 7
        %v387 = vsub.s32 4, %v386
        %v388 = vrot.slane %v284, %v387
        %v391 = vcombine.low %v384, %v388
        %v393 = vmul.f32 %v287, %v391
        %v395 = vcombine.high %v393, %v393
        %397 = vst [vmem:[#allocation2 + $0x20] sm:$0xf] %v393
        %398 = vst [vmem:[#allocation2 + $0x28] sm:$0xf] %v395
        %399 = vrot.lane.b32.xlu0 %v287, 127
        %v400 = vpop.permute.xlu0 %399
        %401 = vrot.lane.b32.xlu0 %v289, 127
        %v402 = vpop.permute.xlu0 %401
        %vm403 = vcmp.lt.s32.totalorder %v296, 127
        %v404 = vsel %vm403, %v400, %v402
        %v405 = vsel %vm403, %v402, %v400
        %v406 = vlaneseq
        %v407 = vshrl.u32 %v406, 7
        %v408 = vsub.s32 5, %v407
        %v409 = vrot.slane %v283, %v408
        %v410 = vlaneseq
        %v411 = vshrl.u32 %v410, 7
        %v412 = vsub.s32 5, %v411
        %v413 = vrot.slane %v284, %v412
        %v414 = vmul.f32 %v404, %v409
        %v415 = vmul.f32 %v405, %v413
        %v418 = vrot.slane %v414, 4
        %v419 = vrot.slane %v415, 4
        %422 = vst [vmem:[#allocation2 + $0x20] sm:$0xf0] %v418
        %423 = vst [vmem:[#allocation2 + $0x28] sm:$0xf0] %v419
        %424 = vrot.lane.b32.xlu0 %v287, 113
        %v425 = vpop.permute.xlu0 %424
        %426 = vrot.lane.b32.xlu0 %v289, 113
        %v427 = vpop.permute.xlu0 %426
        %vm428 = vcmp.lt.s32.totalorder %v296, 113
        %v429 = vsel %vm428, %v425, %v427
        %v430 = vsel %vm428, %v427, %v425
        %v431 = vlaneseq
        %v432 = vshrl.u32 %v431, 7
        %v433 = vsub.s32 6, %v432
        %v434 = vrot.slane %v283, %v433
        %v435 = vlaneseq
        %v436 = vshrl.u32 %v435, 7
        %v437 = vsub.s32 6, %v436
        %v438 = vrot.slane %v284, %v437
        %v439 = vmul.f32 %v429, %v434
        %v440 = vmul.f32 %v430, %v438
        %441 = vst [vmem:[#allocation2 + $0x30] sm:$0xf] %v439
        %442 = vst [vmem:[#allocation2 + $0x38] sm:$0xf] %v440
        %443 = vrot.lane.b32.xlu0 %v287, 112
        %v444 = vpop.permute.xlu0 %443
        %445 = vrot.lane.b32.xlu0 %v289, 112
        %v446 = vpop.permute.xlu0 %445
        %vm447 = vcmp.lt.s32.totalorder %v296, 112
        %v448 = vsel %vm447, %v444, %v446
        %v449 = vsel %vm447, %v446, %v444
        %v450 = vlaneseq
        %v451 = vshrl.u32 %v450, 7
        %v452 = vsub.s32 7, %v451
        %v453 = vrot.slane %v283, %v452
        %v454 = vlaneseq
        %v455 = vshrl.u32 %v454, 7
        %v456 = vsub.s32 7, %v455
        %v457 = vrot.slane %v284, %v456
        %v458 = vmul.f32 %v448, %v453
        %v459 = vmul.f32 %v449, %v457
        %v462 = vrot.slane %v458, 4
        %v463 = vrot.slane %v459, 4
        %466 = vst [vmem:[#allocation2 + $0x30] sm:$0xf0] %v462
        %467 = vst [vmem:[#allocation2 + $0x38] sm:$0xf0] %v463
        %468 = vrot.lane.b32.xlu0 %v287, 111
        %v469 = vpop.permute.xlu0 %468
        %470 = vrot.lane.b32.xlu0 %v289, 111
        %v471 = vpop.permute.xlu0 %470
        %vm472 = vcmp.lt.s32.totalorder %v296, 111
        %v473 = vsel %vm472, %v469, %v471
        %v474 = vsel %vm472, %v471, %v469
        %v475 = vlaneseq
        %v476 = vshrl.u32 %v475, 7
        %v477 = vsub.s32 0, %v476
        %v478 = vrot.slane %v285, %v477
        %v479 = vlaneseq
        %v480 = vshrl.u32 %v479, 7
        %v481 = vsub.s32 0, %v480
        %v482 = vrot.slane %v286, %v481
        %v483 = vmul.f32 %v473, %v478
        %v484 = vmul.f32 %v474, %v482
        %485 = vst [vmem:[#allocation2 + $0x40] sm:$0xf] %v483
        %486 = vst [vmem:[#allocation2 + $0x48] sm:$0xf] %v484
        %v487 = vld [vmem:[%s1] sm:$0xf]
        %v488 = vld [vmem:[#allocation2] sm:$0xff]
        %v489 = vld [vmem:[#allocation2 + $0x8] sm:$0xff]
        %v490 = vld [vmem:[#allocation2 + $0x10] sm:$0xff]
        %v491 = vld [vmem:[#allocation2 + $0x18] sm:$0xff]
        %v492 = vld [vmem:[#allocation2 + $0x20] sm:$0xff]
        %v493 = vld [vmem:[#allocation2 + $0x28] sm:$0xff]
        %v494 = vld [vmem:[#allocation2 + $0x30] sm:$0xff]
        %v495 = vld [vmem:[#allocation2 + $0x38] sm:$0xff]
        %v496 = vld [vmem:[#allocation2 + $0x40] sm:$0xf]
        %v497 = vld [vmem:[#allocation2 + $0x48] sm:$0xf]
        %v498 = vld [vmem:[%s2] sm:$0xf]
        %500 = vset.pattern.permute.xlu0 0
        %501 = vperm.xlu0 %500, %v498
        %v502 = vpop.permute.xlu0 %501
        %vm504 = vcmask 293888
        %v506 = vsel %vm504, %v487, 0
        %vm508 = vcmask 1043456
        %v510 = vsel %vm508, %v496, 0
        %v513 = vsel %vm508, %v497, 0
        %515 = vmatprep.subr.mxu0 %v489
        %516 = vmatpush1.msra.mxu0 %v488
        %517 = vmatprep.subr.mxu0 %v491
        %518 = vmatpush1.msra.mxu0 %v490
        %519 = vmatprep.subr.mxu0 %v493
        %520 = vmatpush1.msra.mxu0 %v492
        %521 = vmatprep.subr.mxu0 %v495
        %522 = vmatpush1.msra.mxu0 %v494
        %523 = vmatprep.subr.mxu0 %v513
        %524 = vmatpush1.msra.mxu0 %v510
        %525 = vmatprep.subr.mxu0 0.0
        %526 = vmatpush1.msra.mxu0 0.0
        %527 = vmatprep.subr.mxu0 0.0
        %528 = vmatpush1.msra.mxu0 0.0
        %529 = vmatprep.subr.mxu0 0.0
        %530 = vmatpush1.msra.mxu0 0.0
        %531 = vmatprep.subr.mxu0 0.0
        %532 = vmatpush1.msra.mxu0 0.0
        %533 = vmatprep.subr.mxu0 0.0
        %534 = vmatpush1.msra.mxu0 0.0
        %535 = vmatprep.subr.mxu0 0.0
        %536 = vmatpush1.msra.mxu0 0.0
        %537 = vmatprep.subr.mxu0 0.0
        %538 = vmatpush1.msra.mxu0 0.0
        %539 = vmatprep.subr.mxu0 0.0
        %540 = vmatpush1.msra.mxu0 0.0
        %541 = vmatprep.subr.mxu0 0.0
        %542 = vmatpush1.msra.mxu0 0.0
        %543 = vmatprep.subr.mxu0 0.0
        %544 = vmatpush1.msra.mxu0 0.0
        %545 = vmatprep.subr.mxu0 0.0
        %546 = vmatpush1.msra.mxu0 0.0
        %547 = vmatprep.subr.mxu0 0.0
        %548 = vmatpush1.msra.mxu0 0.0
        %549 = vmatprep.subr.mxu0 0.0
        %550 = vmatpush1.msra.mxu0 0.0
        %551 = vmatprep.subr.mxu0 0.0
        %552 = vmatpush1.msra.mxu0 0.0
        %553 = vmatprep.subr.mxu0 0.0
        %554 = vmatpush1.msra.mxu0 0.0
        %555 = vmatprep.subr.mxu0 0.0
        %556 = vmatpush1.msra.mxu0 0.0
        %557 = vmatprep.subr.mxu0 0.0
        %558 = vmatpush1.msra.mxu0 0.0
        %559 = vmatprep.subr.mxu0 0.0
        %560 = vmatpush1.msra.mxu0 0.0
        %561 = vmatprep.subr.mxu0 0.0
        %562 = vmatpush1.msra.mxu0 0.0
        %563 = vmatprep.subr.mxu0 0.0
        %564 = vmatpush1.msra.mxu0 0.0
        %565 = vmatprep.subr.mxu0 0.0
        %566 = vmatpush1.msra.mxu0 0.0
        %567 = vmatprep.subr.mxu0 0.0
        %568 = vmatpush1.msra.mxu0 0.0
        %569 = vmatprep.subr.mxu0 0.0
        %570 = vmatpush1.msra.mxu0 0.0
        %571 = vmatprep.subr.mxu0 0.0
        %572 = vmatpush1.msra.mxu0 0.0
        %573 = vmatprep.subr.mxu0 0.0
        %574 = vmatpush1.msra.mxu0 0.0
        %575 = vmatprep.subr.mxu0 0.0
        %576 = vmatpush1.msra.mxu0 0.0
        %577 = vmatprep.subr.mxu0 0.0
        %578 = vmatpush1.msra.mxu0 0.0
        %579 = vmatprep.mubr.f32.mxu0 0.0
        %580 = vmatmul.mubr.f32.gmra.mrb[0].mxu0 %v506
        %v581 = vpop.f32.mrb[0].mxu0
        %v582 = vadd.f32 %v502, %v581
        %v583 = vpop.f32.mrb[0].mxu0
        %v584 = vadd.f32 %v502, %v583
        %585 = vdwg.mxu0
        %v586 = vmax.f32 %v582, 0.0
        %v587 = vmax.f32 %v584, 0.0
        %588 = vrot.lane.b32.xlu0 %v586, 17
        %v589 = vpop.permute.xlu0 %588
        %590 = vrot.lane.b32.xlu0 %v587, 17
        %v591 = vpop.permute.xlu0 %590
        %v592 = vsel %vm297, %v589, %v591
        %v593 = vsel %vm297, %v591, %v589
        %v594 = vmul.f32 %v593, %v303
        %v595 = vmul.f32 %v592, %v307
        %596 = vst [vmem:[#allocation2] sm:$0xf] %v594
        %597 = vst [vmem:[#allocation2 + $0x8] sm:$0xf] %v595
        %598 = vrot.lane.b32.xlu0 %v586, 16
        %v599 = vpop.permute.xlu0 %598
        %600 = vrot.lane.b32.xlu0 %v587, 16
        %v601 = vpop.permute.xlu0 %600
        %v602 = vsel %vm316, %v599, %v601
        %v603 = vsel %vm316, %v601, %v599
        %v604 = vmul.f32 %v603, %v322
        %v605 = vmul.f32 %v602, %v326
        %v608 = vrot.slane %v604, 4
        %v609 = vrot.slane %v605, 4
        %612 = vst [vmem:[#allocation2] sm:$0xf0] %v608
        %613 = vst [vmem:[#allocation2 + $0x8] sm:$0xf0] %v609
        %614 = vrot.lane.b32.xlu0 %v586, 15
        %v615 = vpop.permute.xlu0 %614
        %616 = vrot.lane.b32.xlu0 %v587, 15
        %v617 = vpop.permute.xlu0 %616
        %v618 = vsel %vm341, %v615, %v617
        %v619 = vsel %vm341, %v617, %v615
        %v620 = vmul.f32 %v619, %v347
        %v621 = vmul.f32 %v618, %v351
        %622 = vst [vmem:[#allocation2 + $0x10] sm:$0xf] %v620
        %623 = vst [vmem:[#allocation2 + $0x18] sm:$0xf] %v621
        %624 = vrot.lane.b32.xlu0 %v586, 1
        %v625 = vpop.permute.xlu0 %624
        %626 = vrot.lane.b32.xlu0 %v587, 1
        %v627 = vpop.permute.xlu0 %626
        %v628 = vsel %vm360, %v625, %v627
        %v629 = vsel %vm360, %v627, %v625
        %v630 = vmul.f32 %v629, %v366
        %v631 = vmul.f32 %v628, %v370
        %v634 = vrot.slane %v630, 4
        %v635 = vrot.slane %v631, 4
        %638 = vst [vmem:[#allocation2 + $0x10] sm:$0xf0] %v634
        %639 = vst [vmem:[#allocation2 + $0x18] sm:$0xf0] %v635
        %v640 = vmul.f32 %v586, %v384
        %v641 = vmul.f32 %v587, %v388
        %642 = vst [vmem:[#allocation2 + $0x20] sm:$0xf] %v640
        %643 = vst [vmem:[#allocation2 + $0x28] sm:$0xf] %v641
        %644 = vrot.lane.b32.xlu0 %v586, 127
        %v645 = vpop.permute.xlu0 %644
        %646 = vrot.lane.b32.xlu0 %v587, 127
        %v647 = vpop.permute.xlu0 %646
        %v648 = vsel %vm403, %v645, %v647
        %v649 = vsel %vm403, %v647, %v645
        %v650 = vmul.f32 %v648, %v409
        %v651 = vmul.f32 %v649, %v413
        %v654 = vrot.slane %v650, 4
        %v655 = vrot.slane %v651, 4
        %658 = vst [vmem:[#allocation2 + $0x20] sm:$0xf0] %v654
        %659 = vst [vmem:[#allocation2 + $0x28] sm:$0xf0] %v655
        %660 = vrot.lane.b32.xlu0 %v586, 113
        %v661 = vpop.permute.xlu0 %660
        %662 = vrot.lane.b32.xlu0 %v587, 113
        %v663 = vpop.permute.xlu0 %662
        %v664 = vsel %vm428, %v661, %v663
        %v665 = vsel %vm428, %v663, %v661
        %v666 = vmul.f32 %v664, %v434
        %v667 = vmul.f32 %v665, %v438
        %668 = vst [vmem:[#allocation2 + $0x30] sm:$0xf] %v666
        %669 = vst [vmem:[#allocation2 + $0x38] sm:$0xf] %v667
        %670 = vrot.lane.b32.xlu0 %v586, 112
        %v671 = vpop.permute.xlu0 %670
        %672 = vrot.lane.b32.xlu0 %v587, 112
        %v673 = vpop.permute.xlu0 %672
        %v674 = vsel %vm447, %v671, %v673
        %v675 = vsel %vm447, %v673, %v671
        %v676 = vmul.f32 %v674, %v453
        %v677 = vmul.f32 %v675, %v457
        %v680 = vrot.slane %v676, 4
        %v681 = vrot.slane %v677, 4
        %684 = vst [vmem:[#allocation2 + $0x30] sm:$0xf0] %v680
        %685 = vst [vmem:[#allocation2 + $0x38] sm:$0xf0] %v681
        %686 = vrot.lane.b32.xlu0 %v586, 111
        %v687 = vpop.permute.xlu0 %686
        %688 = vrot.lane.b32.xlu0 %v587, 111
        %v689 = vpop.permute.xlu0 %688
        %v690 = vsel %vm472, %v687, %v689
        %v691 = vsel %vm472, %v689, %v687
        %v692 = vmul.f32 %v690, %v478
        %v693 = vmul.f32 %v691, %v482
        %694 = vst [vmem:[#allocation2 + $0x40] sm:$0xf] %v692
        %695 = vst [vmem:[#allocation2 + $0x48] sm:$0xf] %v693
        %v696 = vld [vmem:[%s3] sm:$0xf]
        %v697 = vld [vmem:[#allocation2] sm:$0xff]
        %v698 = vld [vmem:[#allocation2 + $0x8] sm:$0xff]
        %v699 = vld [vmem:[#allocation2 + $0x10] sm:$0xff]
        %v700 = vld [vmem:[#allocation2 + $0x18] sm:$0xff]
        %v701 = vld [vmem:[#allocation2 + $0x20] sm:$0xff]
        %v702 = vld [vmem:[#allocation2 + $0x28] sm:$0xff]
        %v703 = vld [vmem:[#allocation2 + $0x30] sm:$0xff]
        %v704 = vld [vmem:[#allocation2 + $0x38] sm:$0xff]
        %v705 = vld [vmem:[#allocation2 + $0x40] sm:$0xf]
        %v706 = vld [vmem:[#allocation2 + $0x48] sm:$0xf]
        %v707 = vld [vmem:[%s4] sm:$0xf]
        %709 = vset.pattern.permute.xlu0 0
        %710 = vperm.xlu0 %709, %v707
        %v711 = vpop.permute.xlu0 %710
        %v714 = vsel %vm504, %v696, 0
        %v717 = vsel %vm508, %v705, 0
        %v720 = vsel %vm508, %v706, 0
        %722 = vmatprep.subr.mxu0 %v698
        %723 = vmatpush1.msra.mxu0 %v697
        %724 = vmatprep.subr.mxu0 %v700
        %725 = vmatpush1.msra.mxu0 %v699
        %726 = vmatprep.subr.mxu0 %v702
        %727 = vmatpush1.msra.mxu0 %v701
        %728 = vmatprep.subr.mxu0 %v704
        %729 = vmatpush1.msra.mxu0 %v703
        %730 = vmatprep.subr.mxu0 %v720
        %731 = vmatpush1.msra.mxu0 %v717
        %732 = vmatprep.subr.mxu0 0.0
        %733 = vmatpush1.msra.mxu0 0.0
        %734 = vmatprep.subr.mxu0 0.0
        %735 = vmatpush1.msra.mxu0 0.0
        %736 = vmatprep.subr.mxu0 0.0
        %737 = vmatpush1.msra.mxu0 0.0
        %738 = vmatprep.subr.mxu0 0.0
        %739 = vmatpush1.msra.mxu0 0.0
        %740 = vmatprep.subr.mxu0 0.0
        %741 = vmatpush1.msra.mxu0 0.0
        %742 = vmatprep.subr.mxu0 0.0
        %743 = vmatpush1.msra.mxu0 0.0
        %744 = vmatprep.subr.mxu0 0.0
        %745 = vmatpush1.msra.mxu0 0.0
        %746 = vmatprep.subr.mxu0 0.0
        %747 = vmatpush1.msra.mxu0 0.0
        %748 = vmatprep.subr.mxu0 0.0
        %749 = vmatpush1.msra.mxu0 0.0
        %750 = vmatprep.subr.mxu0 0.0
        %751 = vmatpush1.msra.mxu0 0.0
        %752 = vmatprep.subr.mxu0 0.0
        %753 = vmatpush1.msra.mxu0 0.0
        %754 = vmatprep.subr.mxu0 0.0
        %755 = vmatpush1.msra.mxu0 0.0
        %756 = vmatprep.subr.mxu0 0.0
        %757 = vmatpush1.msra.mxu0 0.0
        %758 = vmatprep.subr.mxu0 0.0
        %759 = vmatpush1.msra.mxu0 0.0
        %760 = vmatprep.subr.mxu0 0.0
        %761 = vmatpush1.msra.mxu0 0.0
        %762 = vmatprep.subr.mxu0 0.0
        %763 = vmatpush1.msra.mxu0 0.0
        %764 = vmatprep.subr.mxu0 0.0
        %765 = vmatpush1.msra.mxu0 0.0
        %766 = vmatprep.subr.mxu0 0.0
        %767 = vmatpush1.msra.mxu0 0.0
        %768 = vmatprep.subr.mxu0 0.0
        %769 = vmatpush1.msra.mxu0 0.0
        %770 = vmatprep.subr.mxu0 0.0
        %771 = vmatpush1.msra.mxu0 0.0
        %772 = vmatprep.subr.mxu0 0.0
        %773 = vmatpush1.msra.mxu0 0.0
        %774 = vmatprep.subr.mxu0 0.0
        %775 = vmatpush1.msra.mxu0 0.0
        %776 = vmatprep.subr.mxu0 0.0
        %777 = vmatpush1.msra.mxu0 0.0
        %778 = vmatprep.subr.mxu0 0.0
        %779 = vmatpush1.msra.mxu0 0.0
        %780 = vmatprep.subr.mxu0 0.0
        %781 = vmatpush1.msra.mxu0 0.0
        %782 = vmatprep.subr.mxu0 0.0
        %783 = vmatpush1.msra.mxu0 0.0
        %784 = vmatprep.subr.mxu0 0.0
        %785 = vmatpush1.msra.mxu0 0.0
        %786 = vmatprep.mubr.f32.mxu0 0.0
        %787 = vmatmul.mubr.f32.gmra.mrb[0].mxu0 %v714
        %v788 = vpop.f32.mrb[0].mxu0
        %v789 = vadd.f32 %v711, %v788
        %v790 = vpop.f32.mrb[0].mxu0
        %v791 = vadd.f32 %v711, %v790
        %792 = vdwg.mxu0
        %v795 = vcombine.low %v789, %v791
        %797 = vst [vmem:[%s282] sm:$0xff] %v795
        %s798 = sand.u32 %s163, 1
        %s799 = scalar_lea.sflag [#allocation5], %s798
        %s800 = sand.u32 %s163, 1
        %s801 = smul.addr %s800, 8
        %s802 = scalar_lea.vmem [#allocation8], %s801
        // Predicated region
        $region53: #{tpu_custom_call.1} parent=43 // pred_check
          %p803 = pneg %p173
        $region54: #{tpu_custom_call.1} parent=43 // pred_check_branch
          %805 = sbr.rel (%p803) target = $region56
        $region55: #{tpu_custom_call.1} parent=43 // pred_region
          %s807 = ssub.s32 128, 128
          %808 = vsyncadd %s799, %s807
          %s809 = smul.addr %s24, 2
          %s810 = smul.addr %s809, 64
          %s811 = scalar_lea.hbm %s6, %s810
          %s813 = sshll.u32 %s802, 4
          %s814 = int_to_ptr.vmem [resolvable:$true] %s813
          %816 = dma.vmem_to_hbm [thread:$0]  %s814, 128, %s811, %s799
        $region56: #{tpu_custom_call.1} parent=43 // pred_fallthru
          _
      $region44: #{tpu_custom_call.1} parent=5 // pred_fallthru
        _
      %p817 = scmp.le.s32.totalorder 2, %s19
      // Predicated region
      $region57: #{tpu_custom_call.1} parent=5 // pred_check
        %p818 = pneg %p817
      $region58: #{tpu_custom_call.1} parent=5 // pred_check_branch
        %820 = sbr.rel (%p818) target = $region60
      $region59: #{tpu_custom_call.1} parent=5 // pred_region
        %s821 = ssub.s32 %s19, 2
        // Predicated region
        $region61: #{tpu_custom_call.1} parent=59 // pred_check
          %p822 = pneg %p179
        $region62: #{tpu_custom_call.1} parent=59 // pred_check_branch
          %824 = sbr.rel (%p822) target = $region64
        $region63: #{tpu_custom_call.1} parent=59 // pred_region
          %s825 = sand.u32 %s164, 1
          %s826 = scalar_lea.sflag [#allocation5], %s825
          %s827 = sand.u32 %s164, 1
          %s828 = smul.addr %s827, 8
          %s829 = scalar_lea.vmem [#allocation8], %s828
          %830 = dma.done %s826, 128
        $region64: #{tpu_custom_call.1} parent=59 // pred_fallthru
          _
      $region60: #{tpu_custom_call.1} parent=5 // pred_fallthru
        _
    $region6: #{tpu_custom_call.1} parent=1 // loop_footer
      %s23 = sadd.s32 1, %s19
    $region7: #{tpu_custom_call.1} parent=1 // loop_footer_branch
      %18 = sbr.rel target = $region3
    $region8: #{tpu_custom_call.1} parent=1 // loop_exit
      _
    %831 = vsyncpa [#allocation4], 1
    %s832 = scalar_lea.sflag [#allocation4], 1
    %833 = vsyncpa %s832, 1
    %834 = vsyncpa [#allocation7], 1
    %835 = vsyncpa [#allocation5], 1
    %s836 = scalar_lea.sflag [#allocation5], 1
    %837 = vsyncpa %s836, 1

</llo_original>
